<compile_context>
chip_gen: v7x
topology: tpu7x:2x2x1
jax: 0.10.0
libtpu: 0.0.40
codegen_flags: <defaults>
</compile_context>

<pallas_src>
import functools

import jax
import jax.numpy as jnp
import numpy as np
from jax import lax
from jax.experimental import pallas as pl
from jax.experimental.pallas import tpu as pltpu


# ----------------------------------------------------------------------------
# Kernel
# ----------------------------------------------------------------------------
def _make_moment_kernel(batch_axis, tb, true_b, ragged):
    """Fused raw-moment accumulation for one (core-slice, batch-tile) grid point.

    Packed accumulator planes (each (tw, td), summed over the whole batch):
      0: sum m        1: sum m*t      2: sum m*t^2    3: sum m*o
      4: sum m*o^2    5: sum m*o*t    6: sum t        7: sum t^2
    With mask in {0,1} (so m^2 == m) these reconstruct every statistic of the
    reference forward in the epilogue:
      sum m*(o-t)^2    = p4 - 2*p5 + p2          (masked MSE numerator)
      sum_b (t - m*o)  = p6 - p3                  (explained-variance diff)
      sum_b (t - m*o)^2= p7 - 2*p5 + p4
    The global target mean cancels in every variance term and 1/std^2 factors
    out, so no standardization is needed inside the kernel.
    """

    def kernel(o_ref, t_ref, m_ref, acc_ref):
        b = pl.program_id(batch_axis)           # batch/reduction axis is last

        o = o_ref[...].astype(jnp.float32)
        t = t_ref[...].astype(jnp.float32)
        m = m_ref[...].astype(jnp.float32)

        if ragged:
            # The last batch tile hangs past the true batch size.  Zero the
            # overhanging rows with a select (not a multiply) so stale VMEM
            # padding -- including NaN bit patterns -- cannot leak into the
            # sums.  This replaces the previous wrapper-side jnp.pad of all
            # three inputs (which tripled HBM traffic when it triggered).
            row = lax.broadcasted_iota(jnp.int32, o.shape, 0) + b * tb
            keep = row < true_b
            zero = jnp.zeros((), jnp.float32)
            o = jnp.where(keep, o, zero)
            t = jnp.where(keep, t, zero)
            m = jnp.where(keep, m, zero)

        mt = m * t
        mo = m * o
        partials = (
            jnp.sum(m, axis=0),
            jnp.sum(mt, axis=0),
            jnp.sum(mt * t, axis=0),
            jnp.sum(mo, axis=0),
            jnp.sum(mo * o, axis=0),
            jnp.sum(mo * t, axis=0),
            jnp.sum(t, axis=0),
            jnp.sum(t * t, axis=0),
        )

        @pl.when(b == 0)
        def _init():
            for i, p in enumerate(partials):
                acc_ref[i, :, :] = p

        @pl.when(b > 0)
        def _acc():
            for i, p in enumerate(partials):
                acc_ref[i, :, :] += p

    return kernel


# ----------------------------------------------------------------------------
# Device / tiling helpers
# ----------------------------------------------------------------------------
def _tpu_info():
    try:
        return pltpu.get_tpu_info()
    except Exception:
        return None


def _device_kind():
    try:
        return jax.devices()[0].device_kind.lower()
    except Exception:
        return ""


def _vmem_capacity_bytes():
    info = _tpu_info()
    cap = getattr(info, "vmem_capacity_bytes", None) if info is not None else None
    try:
        cap = int(cap)
    except (TypeError, ValueError):
        cap = 0
    if cap <= 0:
        cap = 64 << 20          # conservative default: v7x per-TensorCore VMEM
    return cap


def _num_tensorcores():
    """Best-effort TensorCores-per-chip (2 on v7x, 1 on v5e/v6e)."""
    info = _tpu_info()
    for attr in ("num_cores_per_chip", "cores_per_chip",
                 "num_tensorcores_per_chip", "tensorcores_per_chip"):
        v = getattr(info, attr, None) if info is not None else None
        if v is None:
            continue
        try:
            v = int(v)
        except (TypeError, ValueError):
            continue
        if v >= 1:
            return v
    kind = _device_kind()
    if "v7" in kind or kind.startswith("tpu7"):
        return 2
    return 1


def _core_split_semantics():
    """Return (tensorcore count, semantics for the core-split grid axis)."""
    n = _num_tensorcores()
    kind = _device_kind()
    if ("v7" in kind or kind.startswith("tpu7")) and hasattr(pltpu, "CORE_PARALLEL"):
        # Measured: only CORE_PARALLEL actually shards a grid axis across the
        # two v7x TensorCores; plain "parallel" leaves the second TC idle.
        return max(n, 2), pltpu.CORE_PARALLEL
    return n, "parallel"


def _pick_core_split(W, D, n_cores, min_itemsize):
    """Split W or D across TensorCores without breaking native tiling.

    Returns (n_par, tw, td, which) with which in {"w", "d", "none"}.  Disabled
    on single-TC chips (v5e/v6e).  The W split is dtype-aware: the half-width
    tw must stay a multiple of the narrowest input's native sublane tile
    (8 for f32, 16 for bf16, 32 for int8), otherwise narrow-dtype blocks land
    on half a native tile and pay strided DMA / masked sublane ops.
    """
    if n_cores < 2:
        return 1, W, D, "none"
    native_sublanes = 8 * max(1, 4 // max(int(min_itemsize), 1))
    if W % (2 * native_sublanes) == 0:
        return 2, W // 2, D, "w"
    if D % 256 == 0:
        return 2, W, D // 2, "d"
    return 1, W, D, "none"


def _pick_batch_tile(B, tw, td, itemsizes, max_batch_tile):
    """Batch rows per grid step, sized for the full VMEM working set.

    ~1-2 MiB per input buffer per step already saturates HBM, so cap both the
    raw input tile and the f32 working-set tile (casts + fused temporaries)
    instead of handing 35% of VMEM to raw inputs like the previous version.
    """
    step_cap = 2 << 20          # bytes of raw input per buffer per step
    f32_cap = 2 << 20           # bytes of one f32-cast tile
    per_row_raw = tw * td * max(itemsizes)
    per_row_f32 = tw * td * 4
    tb = min(step_cap // max(per_row_raw, 1), f32_cap // max(per_row_f32, 1))
    tb = int(max(1, min(tb, B)))
    if max_batch_tile is not None:
        tb = max(1, min(tb, int(max_batch_tile)))
    if B % tb != 0:
        # Prefer a nearby tile that divides B (no ragged tail); otherwise the
        # kernel masks the tail in-VMEM.  Either way: no wrapper-side jnp.pad.
        for cand in range(tb, max(tb // 2, 1) - 1, -1):
            if B % cand == 0:
                return cand
    return tb


# ----------------------------------------------------------------------------
# Wrapper
# ----------------------------------------------------------------------------
def masked_recon_loss(output, target, mask, *, reduction="mean", std_eps=1e-4,
                      max_batch_tile=None, input_buffer_count=2,
                      force_core_split=None):
    """Pallas equivalent of MaskedReconLoss(reduction, standardize=True).forward."""
    assert output.shape == target.shape == mask.shape, (
        f"MSE loss error: prediction and target don't have the same shape. "
        f"output {output.shape} vs target {target.shape} vs mask {mask.shape}")
    if reduction not in ("mean", "sum"):
        raise ValueError(f"unsupported reduction: {reduction}")
    B, W, D = output.shape
    f32 = jnp.float32

    # The mask streams over HBM as 1 byte; it is cast to f32 only after the
    # tile lands in VMEM (this kernel is HBM-bandwidth bound).
    if mask.dtype == jnp.bool_:
        mask = mask.astype(jnp.int8)

    n_cores, core_sem = _core_split_semantics()
    if force_core_split is not None:
        n_cores = int(force_core_split)
    min_itemsize = min(output.dtype.itemsize, target.dtype.itemsize,
                       mask.dtype.itemsize)
    n_par, tw, td, split = _pick_core_split(W, D, n_cores, min_itemsize)

    itemsizes = (output.dtype.itemsize, target.dtype.itemsize, mask.dtype.itemsize)
    tb = _pick_batch_tile(B, tw, td, itemsizes, max_batch_tile)
    n_b = pl.cdiv(B, tb)
    ragged = (n_b * tb) != B

    if split == "w":
        in_map = lambda p, b: (b, p, 0)
        out_map = lambda p, b: (0, p, 0)
    elif split == "d":
        in_map = lambda p, b: (b, 0, p)
        out_map = lambda p, b: (0, 0, p)
    else:
        in_map = lambda b: (b, 0, 0)
        out_map = lambda b: (0, 0, 0)

    if n_par == 2:
        grid = (2, n_b)
        if isinstance(core_sem, str):
            dims = (core_sem, "arbitrary")
        else:
            dims = (core_sem, getattr(pltpu, "ARBITRARY", "arbitrary"))
    else:
        grid = (n_b,)
        dims = ("arbitrary",)

    spec_kwargs = {}
    if int(input_buffer_count) != 2:
        # e.g. 3 on v5e if per-step DMA turns out to be exposed at ~1-2 MiB tiles.
        spec_kwargs["pipeline_mode"] = pl.Buffered(int(input_buffer_count))
    in_spec = pl.BlockSpec((tb, tw, td), in_map, **spec_kwargs)
    out_spec = pl.BlockSpec((8, tw, td), out_map)

    cap = _vmem_capacity_bytes()
    vmem_limit = int(max(32 << 20, min(96 << 20, int(0.75 * cap))))

    kernel = _make_moment_kernel(len(grid) - 1, tb, B, ragged)

    moments = pl.pallas_call(
        kernel,
        grid=grid,
        in_specs=[in_spec, in_spec, in_spec],
        out_specs=out_spec,
        out_shape=jax.ShapeDtypeStruct((8, W, D), f32),
        compiler_params=pltpu.CompilerParams(
            dimension_semantics=dims,
            vmem_limit_bytes=vmem_limit),
    )(output, target, mask)

    s_m, s_mt, s_mt2, s_mo, s_mo2, s_mot, s_t, s_t2 = (
        moments[i] for i in range(8))

    # ---- tiny scalar epilogue: mean / 1/std^2 scaling + reconstructions ----
    n_sel = jnp.sum(s_m)                            # number of masked elements
    target_mean = jnp.sum(s_mt) / n_sel
    # E[(t-mean)^2 | mask] == E[t^2 | mask] - mean^2.  The clamp guards f32
    # cancellation; TODO(synk): a centered two-pass variance would be more
    # robust when |target mean| >> target std, at the cost of a second pass
    # over target+mask.
    target_var = jnp.maximum(jnp.sum(s_mt2) / n_sel - target_mean * target_mean, 0.0)
    target_std = jnp.sqrt(target_var) + std_eps
    inv_var = 1.0 / (target_std * target_std)       # = 1 / std^2

    # sum over masked elements of (o_std - t_std)^2, using m^2 == m:
    sq_sum = (jnp.sum(s_mo2) - 2.0 * jnp.sum(s_mot) + jnp.sum(s_mt2)) * inv_var
    loss = sq_sum / n_sel if reduction == "mean" else sq_sum

    # torchmetrics.functional.explained_variance(preds=output_standardized,
    # target=target_standardized, multioutput='uniform_average'): per-(w,d)
    # variances over the batch dim; the global mean shift cancels and 1/std^2
    # is applied here.  TODO(synk): the self.loss_mean branch
    # (rsq = 1 - loss.item()/loss_mean) needs a host-synced python float;
    # only the explained_variance branch is implemented.
    n_obs = jnp.asarray(B, f32)
    se = s_t - s_mo                                  # sum_b (t - m*o)
    sse = s_t2 - 2.0 * s_mot + s_mo2                 # sum_b (t - m*o)^2
    diff_avg = se / n_obs
    numerator = (sse / n_obs - diff_avg * diff_avg) * inv_var
    target_avg = s_t / n_obs
    denominator = (s_t2 / n_obs - target_avg * target_avg) * inv_var
    nonzero_num = numerator != 0
    nonzero_den = denominator != 0
    valid = nonzero_num & nonzero_den
    safe_den = jnp.where(nonzero_den, denominator, 1.0)
    scores = jnp.ones_like(diff_avg)
    scores = jnp.where(valid, 1.0 - numerator / safe_den, scores)
    scores = jnp.where(nonzero_num & (~nonzero_den), 0.0, scores)
    rsq = jnp.mean(scores)

    return {"loss_recon": loss, "rsq": rsq}


# ----------------------------------------------------------------------------
# Pure-JAX reference (mirrors the PyTorch forward with standardize=True)
# ----------------------------------------------------------------------------
def masked_recon_loss_ref(output, target, mask, *, reduction="mean", std_eps=1e-4):
    output = output.astype(jnp.float32)
    target = target.astype(jnp.float32)
    mb = mask.astype(bool)
    mask = mask.astype(jnp.float32)
    output = mask * output
    n = jnp.sum(mask)
    target_mean = jnp.sum(jnp.where(mb, target, 0.0)) / n
    target_var = jnp.sum(jnp.where(mb, (target - target_mean) ** 2, 0.0)) / n
    target_std = jnp.sqrt(target_var) + std_eps
    t_std = (target - target_mean) / target_std
    o_std = (output - target_mean) / target_std
    err2 = jnp.where(mb, (o_std - t_std) ** 2, 0.0)
    loss = jnp.sum(err2) / n if reduction == "mean" else jnp.sum(err2)
    diff = t_std - o_std
    n_obs = float(output.shape[0])
    diff_avg = jnp.sum(diff, axis=0) / n_obs
    numerator = jnp.sum(diff * diff, axis=0) / n_obs - diff_avg ** 2
    target_avg = jnp.sum(t_std, axis=0) / n_obs
    denominator = jnp.sum(t_std * t_std, axis=0) / n_obs - target_avg ** 2
    nonzero_num = numerator != 0
    nonzero_den = denominator != 0
    valid = nonzero_num & nonzero_den
    safe_den = jnp.where(nonzero_den, denominator, 1.0)
    scores = jnp.ones_like(diff_avg)
    scores = jnp.where(valid, 1.0 - numerator / safe_den, scores)
    scores = jnp.where(nonzero_num & (~nonzero_den), 0.0, scores)
    return {"loss_recon": loss, "rsq": jnp.mean(scores)}


def _check(out, ref, tol, name):
    ok_loss = np.allclose(float(out["loss_recon"]), float(ref["loss_recon"]),
                          rtol=tol, atol=tol)
    ok_rsq = np.allclose(float(out["rsq"]), float(ref["rsq"]), rtol=tol, atol=tol)
    assert ok_loss and ok_rsq, (name, {k: float(v) for k, v in out.items()},
                                {k: float(v) for k, v in ref.items()})


if __name__ == "__main__":
    key = jax.random.PRNGKey(0)
    ks = jax.random.split(key, 9)

    # ---- test 1: f32 activations, bool mask (streams as int8), one batch tile.
    B, W, D = 4, 8, 128
    o1 = jax.random.normal(ks[0], (B, W, D), dtype=jnp.float32)
    t1 = jax.random.normal(ks[1], (B, W, D), dtype=jnp.float32)
    m1 = jax.random.uniform(ks[2], (B, W, D)) < 0.5
    run1 = jax.jit(functools.partial(masked_recon_loss, reduction="mean",
                                     std_eps=1e-4))
    out1 = jax.block_until_ready(run1(o1, t1, m1))
    ref1 = masked_recon_loss_ref(o1, t1, m1, reduction="mean", std_eps=1e-4)
    _check(out1, ref1, 1e-3, "test1")

    # ---- test 2: bf16 activations + int8 mask, non-zero target mean,
    #      batch tiling picks a divisor of B (tb=3, no pad), reduction="sum".
    B2, W2, D2 = 6, 16, 128
    o2 = jax.random.normal(ks[3], (B2, W2, D2), dtype=jnp.float32).astype(jnp.bfloat16)
    t2 = (jax.random.normal(ks[4], (B2, W2, D2), dtype=jnp.float32) + 2.5
          ).astype(jnp.bfloat16)
    m2 = (jax.random.uniform(ks[5], (B2, W2, D2)) < 0.5).astype(jnp.int8)
    run2 = jax.jit(functools.partial(masked_recon_loss, reduction="sum",
                                     std_eps=1e-4, max_batch_tile=4))
    out2 = jax.block_until_ready(run2(o2, t2, m2))
    ref2 = masked_recon_loss_ref(o2, t2, m2, reduction="sum", std_eps=1e-4)
    _check(out2, ref2, 2e-3, "test2")

    # ---- test 3: prime batch (ragged last tile masked in-kernel, no jnp.pad)
    #      + forced 2-way core split along D (CORE_PARALLEL on v7x, plain
    #      "parallel" hint elsewhere -- safe/sequential on single-TC chips).
    B3, W3, D3 = 7, 8, 256
    o3 = jax.random.normal(ks[6], (B3, W3, D3), dtype=jnp.float32)
    t3 = jax.random.normal(ks[7], (B3, W3, D3), dtype=jnp.float32) + 1.0
    m3 = (jax.random.uniform(ks[8], (B3, W3, D3)) < 0.5).astype(jnp.float32)
    run3 = jax.jit(functools.partial(masked_recon_loss, reduction="mean",
                                     std_eps=1e-4, max_batch_tile=4,
                                     force_core_split=2))
    out3 = jax.block_until_ready(run3(o3, t3, m3))
    ref3 = masked_recon_loss_ref(o3, t3, m3, reduction="mean", std_eps=1e-4)
    _check(out3, ref3, 1e-3, "test3")

    print("KERNEL_OK")
</pallas_src>

<mosaic_0001>
module attributes {stable_mosaic.version = 11 : i64} {
  func.func @kernel(%arg0: i32, %arg1: memref<4x8x128xf32, #tpu.memory_space<vmem>>, %arg2: memref<4x8x128xf32, #tpu.memory_space<vmem>>, %arg3: memref<4x8x128xi8, #tpu.memory_space<vmem>>, %arg4: memref<8x8x128xf32, #tpu.memory_space<vmem>>) attributes {dimension_semantics = [#tpu.dimension_semantics<arbitrary>], iteration_bounds = array<i64: 1>, scalar_prefetch = 0 : i64, scratch_operands = 0 : i64, tpu.core_type = #tpu.core_type<tc>, window_params = [{transform_indices = @transform_0, window_bounds = array<i64: 4, 8, 128>}, {transform_indices = @transform_1, window_bounds = array<i64: 4, 8, 128>}, {transform_indices = @transform_2, window_bounds = array<i64: 4, 8, 128>}, {pipeline_mode = #tpu.pipeline_mode<synchronous>, transform_indices = @transform_3, window_bounds = array<i64: 8, 8, 128>}]} {
    %c0 = arith.constant 0 : index
    %c0_0 = arith.constant 0 : index
    %c0_1 = arith.constant 0 : index
    %0 = vector.load %arg1[%c0, %c0_0, %c0_1] : memref<4x8x128xf32, #tpu.memory_space<vmem>>, vector<4x8x128xf32>
    %c0_2 = arith.constant 0 : index
    %c0_3 = arith.constant 0 : index
    %c0_4 = arith.constant 0 : index
    %1 = vector.load %arg2[%c0_2, %c0_3, %c0_4] : memref<4x8x128xf32, #tpu.memory_space<vmem>>, vector<4x8x128xf32>
    %c0_5 = arith.constant 0 : index
    %c0_6 = arith.constant 0 : index
    %c0_7 = arith.constant 0 : index
    %2 = vector.load %arg3[%c0_5, %c0_6, %c0_7] : memref<4x8x128xi8, #tpu.memory_space<vmem>>, vector<4x8x128xi8>
    %3 = arith.sitofp %2 : vector<4x8x128xi8> to vector<4x8x128xf32>
    %4 = arith.mulf %3, %1 : vector<4x8x128xf32>
    %5 = arith.mulf %3, %0 : vector<4x8x128xf32>
    %cst = arith.constant dense<0.000000e+00> : vector<8x128xf32>
    %6 = vector.multi_reduction <add>, %3, %cst [0] : vector<4x8x128xf32> to vector<8x128xf32>
    %cst_8 = arith.constant dense<0.000000e+00> : vector<8x128xf32>
    %7 = vector.multi_reduction <add>, %4, %cst_8 [0] : vector<4x8x128xf32> to vector<8x128xf32>
    %8 = arith.mulf %4, %1 : vector<4x8x128xf32>
    %cst_9 = arith.constant dense<0.000000e+00> : vector<8x128xf32>
    %9 = vector.multi_reduction <add>, %8, %cst_9 [0] : vector<4x8x128xf32> to vector<8x128xf32>
    %cst_10 = arith.constant dense<0.000000e+00> : vector<8x128xf32>
    %10 = vector.multi_reduction <add>, %5, %cst_10 [0] : vector<4x8x128xf32> to vector<8x128xf32>
    %11 = arith.mulf %5, %0 : vector<4x8x128xf32>
    %cst_11 = arith.constant dense<0.000000e+00> : vector<8x128xf32>
    %12 = vector.multi_reduction <add>, %11, %cst_11 [0] : vector<4x8x128xf32> to vector<8x128xf32>
    %13 = arith.mulf %5, %1 : vector<4x8x128xf32>
    %cst_12 = arith.constant dense<0.000000e+00> : vector<8x128xf32>
    %14 = vector.multi_reduction <add>, %13, %cst_12 [0] : vector<4x8x128xf32> to vector<8x128xf32>
    %cst_13 = arith.constant dense<0.000000e+00> : vector<8x128xf32>
    %15 = vector.multi_reduction <add>, %1, %cst_13 [0] : vector<4x8x128xf32> to vector<8x128xf32>
    %16 = arith.mulf %1, %1 : vector<4x8x128xf32>
    %cst_14 = arith.constant dense<0.000000e+00> : vector<8x128xf32>
    %17 = vector.multi_reduction <add>, %16, %cst_14 [0] : vector<4x8x128xf32> to vector<8x128xf32>
    %c0_i32 = arith.constant 0 : i32
    %18 = arith.cmpi eq, %arg0, %c0_i32 : i32
    %19 = arith.extui %18 : i1 to i32
    %c0_i32_15 = arith.constant 0 : i32
    %20 = arith.cmpi ne, %19, %c0_i32_15 : i32
    scf.if %20 {
      %c0_18 = arith.constant 0 : index
      %c0_19 = arith.constant 0 : index
      %c0_20 = arith.constant 0 : index
      %24 = vector.load %arg4[%c0_18, %c0_19, %c0_20] : memref<8x8x128xf32, #tpu.memory_space<vmem>>, vector<1x8x128xf32>
      %25 = vector.shape_cast %24 : vector<1x8x128xf32> to vector<8x128xf32>
      %26 = vector.shape_cast %6 : vector<8x128xf32> to vector<1x8x128xf32>
      tpu.vector_store %arg4[%c0_18, %c0_19, %c0_20], %26 {strides = array<i32>} : memref<8x8x128xf32, #tpu.memory_space<vmem>>, vector<1x8x128xf32>,
      %c1 = arith.constant 1 : index
      %c0_21 = arith.constant 0 : index
      %c0_22 = arith.constant 0 : index
      %27 = vector.load %arg4[%c1, %c0_21, %c0_22] : memref<8x8x128xf32, #tpu.memory_space<vmem>>, vector<1x8x128xf32>
      %28 = vector.shape_cast %27 : vector<1x8x128xf32> to vector<8x128xf32>
      %29 = vector.shape_cast %7 : vector<8x128xf32> to vector<1x8x128xf32>
      tpu.vector_store %arg4[%c1, %c0_21, %c0_22], %29 {strides = array<i32>} : memref<8x8x128xf32, #tpu.memory_space<vmem>>, vector<1x8x128xf32>,
      %c2 = arith.constant 2 : index
      %c0_23 = arith.constant 0 : index
      %c0_24 = arith.constant 0 : index
      %30 = vector.load %arg4[%c2, %c0_23, %c0_24] : memref<8x8x128xf32, #tpu.memory_space<vmem>>, vector<1x8x128xf32>
      %31 = vector.shape_cast %30 : vector<1x8x128xf32> to vector<8x128xf32>
      %32 = vector.shape_cast %9 : vector<8x128xf32> to vector<1x8x128xf32>
      tpu.vector_store %arg4[%c2, %c0_23, %c0_24], %32 {strides = array<i32>} : memref<8x8x128xf32, #tpu.memory_space<vmem>>, vector<1x8x128xf32>,
      %c3 = arith.constant 3 : index
      %c0_25 = arith.constant 0 : index
      %c0_26 = arith.constant 0 : index
      %33 = vector.load %arg4[%c3, %c0_25, %c0_26] : memref<8x8x128xf32, #tpu.memory_space<vmem>>, vector<1x8x128xf32>
      %34 = vector.shape_cast %33 : vector<1x8x128xf32> to vector<8x128xf32>
      %35 = vector.shape_cast %10 : vector<8x128xf32> to vector<1x8x128xf32>
      tpu.vector_store %arg4[%c3, %c0_25, %c0_26], %35 {strides = array<i32>} : memref<8x8x128xf32, #tpu.memory_space<vmem>>, vector<1x8x128xf32>,
      %c4 = arith.constant 4 : index
      %c0_27 = arith.constant 0 : index
      %c0_28 = arith.constant 0 : index
      %36 = vector.load %arg4[%c4, %c0_27, %c0_28] : memref<8x8x128xf32, #tpu.memory_space<vmem>>, vector<1x8x128xf32>
      %37 = vector.shape_cast %36 : vector<1x8x128xf32> to vector<8x128xf32>
      %38 = vector.shape_cast %12 : vector<8x128xf32> to vector<1x8x128xf32>
      tpu.vector_store %arg4[%c4, %c0_27, %c0_28], %38 {strides = array<i32>} : memref<8x8x128xf32, #tpu.memory_space<vmem>>, vector<1x8x128xf32>,
      %c5 = arith.constant 5 : index
      %c0_29 = arith.constant 0 : index
      %c0_30 = arith.constant 0 : index
      %39 = vector.load %arg4[%c5, %c0_29, %c0_30] : memref<8x8x128xf32, #tpu.memory_space<vmem>>, vector<1x8x128xf32>
      %40 = vector.shape_cast %39 : vector<1x8x128xf32> to vector<8x128xf32>
      %41 = vector.shape_cast %14 : vector<8x128xf32> to vector<1x8x128xf32>
      tpu.vector_store %arg4[%c5, %c0_29, %c0_30], %41 {strides = array<i32>} : memref<8x8x128xf32, #tpu.memory_space<vmem>>, vector<1x8x128xf32>,
      %c6 = arith.constant 6 : index
      %c0_31 = arith.constant 0 : index
      %c0_32 = arith.constant 0 : index
      %42 = vector.load %arg4[%c6, %c0_31, %c0_32] : memref<8x8x128xf32, #tpu.memory_space<vmem>>, vector<1x8x128xf32>
      %43 = vector.shape_cast %42 : vector<1x8x128xf32> to vector<8x128xf32>
      %44 = vector.shape_cast %15 : vector<8x128xf32> to vector<1x8x128xf32>
      tpu.vector_store %arg4[%c6, %c0_31, %c0_32], %44 {strides = array<i32>} : memref<8x8x128xf32, #tpu.memory_space<vmem>>, vector<1x8x128xf32>,
      %c7 = arith.constant 7 : index
      %c0_33 = arith.constant 0 : index
      %c0_34 = arith.constant 0 : index
      %45 = vector.load %arg4[%c7, %c0_33, %c0_34] : memref<8x8x128xf32, #tpu.memory_space<vmem>>, vector<1x8x128xf32>
      %46 = vector.shape_cast %45 : vector<1x8x128xf32> to vector<8x128xf32>
      %47 = vector.shape_cast %17 : vector<8x128xf32> to vector<1x8x128xf32>
      tpu.vector_store %arg4[%c7, %c0_33, %c0_34], %47 {strides = array<i32>} : memref<8x8x128xf32, #tpu.memory_space<vmem>>, vector<1x8x128xf32>,
    } else {
    }
    %c0_i32_16 = arith.constant 0 : i32
    %21 = arith.cmpi sgt, %arg0, %c0_i32_16 : i32
    %22 = arith.extui %21 : i1 to i32
    %c0_i32_17 = arith.constant 0 : i32
    %23 = arith.cmpi ne, %22, %c0_i32_17 : i32
    scf.if %23 {
      %c0_18 = arith.constant 0 : index
      %c0_19 = arith.constant 0 : index
      %c0_20 = arith.constant 0 : index
      %24 = vector.load %arg4[%c0_18, %c0_19, %c0_20] : memref<8x8x128xf32, #tpu.memory_space<vmem>>, vector<1x8x128xf32>
      %25 = vector.shape_cast %24 : vector<1x8x128xf32> to vector<8x128xf32>
      %26 = arith.addf %25, %6 : vector<8x128xf32>
      %c0_21 = arith.constant 0 : index
      %c0_22 = arith.constant 0 : index
      %c0_23 = arith.constant 0 : index
      %27 = vector.load %arg4[%c0_21, %c0_22, %c0_23] : memref<8x8x128xf32, #tpu.memory_space<vmem>>, vector<1x8x128xf32>
      %28 = vector.shape_cast %27 : vector<1x8x128xf32> to vector<8x128xf32>
      %29 = vector.shape_cast %26 : vector<8x128xf32> to vector<1x8x128xf32>
      tpu.vector_store %arg4[%c0_21, %c0_22, %c0_23], %29 {strides = array<i32>} : memref<8x8x128xf32, #tpu.memory_space<vmem>>, vector<1x8x128xf32>,
      %c1 = arith.constant 1 : index
      %c0_24 = arith.constant 0 : index
      %c0_25 = arith.constant 0 : index
      %30 = vector.load %arg4[%c1, %c0_24, %c0_25] : memref<8x8x128xf32, #tpu.memory_space<vmem>>, vector<1x8x128xf32>
      %31 = vector.shape_cast %30 : vector<1x8x128xf32> to vector<8x128xf32>
      %32 = arith.addf %31, %7 : vector<8x128xf32>
      %c1_26 = arith.constant 1 : index
      %c0_27 = arith.constant 0 : index
      %c0_28 = arith.constant 0 : index
      %33 = vector.load %arg4[%c1_26, %c0_27, %c0_28] : memref<8x8x128xf32, #tpu.memory_space<vmem>>, vector<1x8x128xf32>
      %34 = vector.shape_cast %33 : vector<1x8x128xf32> to vector<8x128xf32>
      %35 = vector.shape_cast %32 : vector<8x128xf32> to vector<1x8x128xf32>
      tpu.vector_store %arg4[%c1_26, %c0_27, %c0_28], %35 {strides = array<i32>} : memref<8x8x128xf32, #tpu.memory_space<vmem>>, vector<1x8x128xf32>,
      %c2 = arith.constant 2 : index
      %c0_29 = arith.constant 0 : index
      %c0_30 = arith.constant 0 : index
      %36 = vector.load %arg4[%c2, %c0_29, %c0_30] : memref<8x8x128xf32, #tpu.memory_space<vmem>>, vector<1x8x128xf32>
      %37 = vector.shape_cast %36 : vector<1x8x128xf32> to vector<8x128xf32>
      %38 = arith.addf %37, %9 : vector<8x128xf32>
      %c2_31 = arith.constant 2 : index
      %c0_32 = arith.constant 0 : index
      %c0_33 = arith.constant 0 : index
      %39 = vector.load %arg4[%c2_31, %c0_32, %c0_33] : memref<8x8x128xf32, #tpu.memory_space<vmem>>, vector<1x8x128xf32>
      %40 = vector.shape_cast %39 : vector<1x8x128xf32> to vector<8x128xf32>
      %41 = vector.shape_cast %38 : vector<8x128xf32> to vector<1x8x128xf32>
      tpu.vector_store %arg4[%c2_31, %c0_32, %c0_33], %41 {strides = array<i32>} : memref<8x8x128xf32, #tpu.memory_space<vmem>>, vector<1x8x128xf32>,
      %c3 = arith.constant 3 : index
      %c0_34 = arith.constant 0 : index
      %c0_35 = arith.constant 0 : index
      %42 = vector.load %arg4[%c3, %c0_34, %c0_35] : memref<8x8x128xf32, #tpu.memory_space<vmem>>, vector<1x8x128xf32>
      %43 = vector.shape_cast %42 : vector<1x8x128xf32> to vector<8x128xf32>
      %44 = arith.addf %43, %10 : vector<8x128xf32>
      %c3_36 = arith.constant 3 : index
      %c0_37 = arith.constant 0 : index
      %c0_38 = arith.constant 0 : index
      %45 = vector.load %arg4[%c3_36, %c0_37, %c0_38] : memref<8x8x128xf32, #tpu.memory_space<vmem>>, vector<1x8x128xf32>
      %46 = vector.shape_cast %45 : vector<1x8x128xf32> to vector<8x128xf32>
      %47 = vector.shape_cast %44 : vector<8x128xf32> to vector<1x8x128xf32>
      tpu.vector_store %arg4[%c3_36, %c0_37, %c0_38], %47 {strides = array<i32>} : memref<8x8x128xf32, #tpu.memory_space<vmem>>, vector<1x8x128xf32>,
      %c4 = arith.constant 4 : index
      %c0_39 = arith.constant 0 : index
      %c0_40 = arith.constant 0 : index
      %48 = vector.load %arg4[%c4, %c0_39, %c0_40] : memref<8x8x128xf32, #tpu.memory_space<vmem>>, vector<1x8x128xf32>
      %49 = vector.shape_cast %48 : vector<1x8x128xf32> to vector<8x128xf32>
      %50 = arith.addf %49, %12 : vector<8x128xf32>
      %c4_41 = arith.constant 4 : index
      %c0_42 = arith.constant 0 : index
      %c0_43 = arith.constant 0 : index
      %51 = vector.load %arg4[%c4_41, %c0_42, %c0_43] : memref<8x8x128xf32, #tpu.memory_space<vmem>>, vector<1x8x128xf32>
      %52 = vector.shape_cast %51 : vector<1x8x128xf32> to vector<8x128xf32>
      %53 = vector.shape_cast %50 : vector<8x128xf32> to vector<1x8x128xf32>
      tpu.vector_store %arg4[%c4_41, %c0_42, %c0_43], %53 {strides = array<i32>} : memref<8x8x128xf32, #tpu.memory_space<vmem>>, vector<1x8x128xf32>,
      %c5 = arith.constant 5 : index
      %c0_44 = arith.constant 0 : index
      %c0_45 = arith.constant 0 : index
      %54 = vector.load %arg4[%c5, %c0_44, %c0_45] : memref<8x8x128xf32, #tpu.memory_space<vmem>>, vector<1x8x128xf32>
      %55 = vector.shape_cast %54 : vector<1x8x128xf32> to vector<8x128xf32>
      %56 = arith.addf %55, %14 : vector<8x128xf32>
      %c5_46 = arith.constant 5 : index
      %c0_47 = arith.constant 0 : index
      %c0_48 = arith.constant 0 : index
      %57 = vector.load %arg4[%c5_46, %c0_47, %c0_48] : memref<8x8x128xf32, #tpu.memory_space<vmem>>, vector<1x8x128xf32>
      %58 = vector.shape_cast %57 : vector<1x8x128xf32> to vector<8x128xf32>
      %59 = vector.shape_cast %56 : vector<8x128xf32> to vector<1x8x128xf32>
      tpu.vector_store %arg4[%c5_46, %c0_47, %c0_48], %59 {strides = array<i32>} : memref<8x8x128xf32, #tpu.memory_space<vmem>>, vector<1x8x128xf32>,
      %c6 = arith.constant 6 : index
      %c0_49 = arith.constant 0 : index
      %c0_50 = arith.constant 0 : index
      %60 = vector.load %arg4[%c6, %c0_49, %c0_50] : memref<8x8x128xf32, #tpu.memory_space<vmem>>, vector<1x8x128xf32>
      %61 = vector.shape_cast %60 : vector<1x8x128xf32> to vector<8x128xf32>
      %62 = arith.addf %61, %15 : vector<8x128xf32>
      %c6_51 = arith.constant 6 : index
      %c0_52 = arith.constant 0 : index
      %c0_53 = arith.constant 0 : index
      %63 = vector.load %arg4[%c6_51, %c0_52, %c0_53] : memref<8x8x128xf32, #tpu.memory_space<vmem>>, vector<1x8x128xf32>
      %64 = vector.shape_cast %63 : vector<1x8x128xf32> to vector<8x128xf32>
      %65 = vector.shape_cast %62 : vector<8x128xf32> to vector<1x8x128xf32>
      tpu.vector_store %arg4[%c6_51, %c0_52, %c0_53], %65 {strides = array<i32>} : memref<8x8x128xf32, #tpu.memory_space<vmem>>, vector<1x8x128xf32>,
      %c7 = arith.constant 7 : index
      %c0_54 = arith.constant 0 : index
      %c0_55 = arith.constant 0 : index
      %66 = vector.load %arg4[%c7, %c0_54, %c0_55] : memref<8x8x128xf32, #tpu.memory_space<vmem>>, vector<1x8x128xf32>
      %67 = vector.shape_cast %66 : vector<1x8x128xf32> to vector<8x128xf32>
      %68 = arith.addf %67, %17 : vector<8x128xf32>
      %c7_56 = arith.constant 7 : index
      %c0_57 = arith.constant 0 : index
      %c0_58 = arith.constant 0 : index
      %69 = vector.load %arg4[%c7_56, %c0_57, %c0_58] : memref<8x8x128xf32, #tpu.memory_space<vmem>>, vector<1x8x128xf32>
      %70 = vector.shape_cast %69 : vector<1x8x128xf32> to vector<8x128xf32>
      %71 = vector.shape_cast %68 : vector<8x128xf32> to vector<1x8x128xf32>
      tpu.vector_store %arg4[%c7_56, %c0_57, %c0_58], %71 {strides = array<i32>} : memref<8x8x128xf32, #tpu.memory_space<vmem>>, vector<1x8x128xf32>,
    } else {
    }
    return
  }
  func.func @transform_0(%arg0: i32) -> (i32, i32, i32) {
    %c0_i32 = arith.constant 0 : i32
    %c0_i32_0 = arith.constant 0 : i32
    %c0_i32_1 = arith.constant 0 : i32
    return %arg0, %c0_i32, %c0_i32_0 : i32, i32, i32
  }
  func.func @transform_1(%arg0: i32) -> (i32, i32, i32) {
    %c0_i32 = arith.constant 0 : i32
    %c0_i32_0 = arith.constant 0 : i32
    %c0_i32_1 = arith.constant 0 : i32
    return %arg0, %c0_i32, %c0_i32_0 : i32, i32, i32
  }
  func.func @transform_2(%arg0: i32) -> (i32, i32, i32) {
    %c0_i32 = arith.constant 0 : i32
    %c0_i32_0 = arith.constant 0 : i32
    %c0_i32_1 = arith.constant 0 : i32
    return %arg0, %c0_i32, %c0_i32_0 : i32, i32, i32
  }
  func.func @transform_3(%arg0: i32) -> (i32, i32, i32) {
    %c0_i32 = arith.constant 0 : i32
    %c0_i32_0 = arith.constant 0 : i32
    %c0_i32_1 = arith.constant 0 : i32
    %c0_i32_2 = arith.constant 0 : i32
    return %c0_i32, %c0_i32_0, %c0_i32_1 : i32, i32, i32
  }
}

</mosaic_0001>

<llo_original>
// kernel: masked_recon_loss.1
$region0: #{masked_recon_loss.1}
  #allocation0 [shape = 'u32[]', space=smem, size = 0x4, offset = 0x4, fixed_abs, tag = 'smem constant byte address 0x4 - core index']
  #allocation1 [shape = 'u32[144,128]{1,0:T(1,128)}', space=vmem, size = 0x12000, scoped, tag = 'internal scratch']
  %s0 = inlined_call_operand.hbm [shape: f32[4,8,128], index: 0, kind: input, shape index: {}]
  %s1 = inlined_call_operand.hbm [shape: f32[4,8,128], index: 1, kind: input, shape index: {}]
  %s2 = inlined_call_operand.vmem [shape: s8[4,8,128], index: 2, kind: input, shape index: {}]
  %s3 = inlined_call_operand.vmem [shape: f32[8,8,128], index: 3, kind: output, shape index: {}]
  %s4 = sld [smem:[#allocation0]]
  $region38: #{masked_recon_loss.1} parent=0
    _
  %s6 = ssub.s32 1, %s4
  %s7 = scalar_select 0, %s6, %s4
  $region1: #{masked_recon_loss.1} parent=0
    #allocation2 [shape = 'u8[16384]{0}', space=vmem, size = 0x4000, scoped, tag = 'input window, operand 0, single buffered']
    #allocation3 [shape = 's32[1]{0}', space=sflag, size = 0x4, scoped, tag = 'scoped memory for masked_recon_loss.1']
    #allocation4 [shape = 'u8[16384]{0}', space=vmem, size = 0x4000, scoped, tag = 'input window, operand 1, single buffered']
    #allocation5 [shape = 's32[1]{0}', space=sflag, size = 0x4, scoped, tag = 'scoped memory for masked_recon_loss.1']
    %8 = vsyncpa [#allocation3], 0
    %9 = vsyncpa [#allocation5], 0
    // Predicated region
    $region2: #{masked_recon_loss.1} parent=1 // pred_check
      _
    $region3: #{masked_recon_loss.1} parent=1 // pred_check_branch
      %11 = sbr.rel (0) target = $region5
    $region4: #{masked_recon_loss.1} parent=1 // pred_region
      %s13 = ssub.s32 512, 512
      %14 = vsyncadd [#allocation3], %s13
      %s15 = sshll.u32 [#allocation2], 4
      %s16 = int_to_ptr.vmem [resolvable:$true] %s15
      %21 = dma.hbm_to_vmem [thread:$0]  %s0, 512, %s16, [#allocation3], 128, 128, 8
    $region5: #{masked_recon_loss.1} parent=1 // pred_fallthru
      _
    // Predicated region
    $region6: #{masked_recon_loss.1} parent=1 // pred_check
      _
    $region7: #{masked_recon_loss.1} parent=1 // pred_check_branch
      %23 = sbr.rel (0) target = $region9
    $region8: #{masked_recon_loss.1} parent=1 // pred_region
      %s25 = ssub.s32 512, 512
      %26 = vsyncadd [#allocation5], %s25
      %s27 = sshll.u32 [#allocation4], 4
      %s28 = int_to_ptr.vmem [resolvable:$true] %s27
      %33 = dma.hbm_to_vmem [thread:$0]  %s1, 512, %s28, [#allocation5], 128, 128, 8
    $region9: #{masked_recon_loss.1} parent=1 // pred_fallthru
      _
    // Predicated region
    $region10: #{masked_recon_loss.1} parent=1 // pred_check
      _
    $region11: #{masked_recon_loss.1} parent=1 // pred_check_branch
      %35 = sbr.rel (0) target = $region13
    $region12: #{masked_recon_loss.1} parent=1 // pred_region
      _
    $region13: #{masked_recon_loss.1} parent=1 // pred_fallthru
      _
    // Predicated region
    $region14: #{masked_recon_loss.1} parent=1 // pred_check
      _
    $region15: #{masked_recon_loss.1} parent=1 // pred_check_branch
      %37 = sbr.rel (0) target = $region17
    $region16: #{masked_recon_loss.1} parent=1 // pred_region
      %38 = dma.done [#allocation3], 512
    $region17: #{masked_recon_loss.1} parent=1 // pred_fallthru
      _
    // Predicated region
    $region18: #{masked_recon_loss.1} parent=1 // pred_check
      _
    $region19: #{masked_recon_loss.1} parent=1 // pred_check_branch
      %40 = sbr.rel (0) target = $region21
    $region20: #{masked_recon_loss.1} parent=1 // pred_region
      %41 = dma.done [#allocation5], 512
    $region21: #{masked_recon_loss.1} parent=1 // pred_fallthru
      _
    %v42 = vld [vmem:[#allocation2] sm:$0xff]
    %v43 = vld [vmem:[#allocation2 + $0x8] sm:$0xff]
    %v44 = vld [vmem:[#allocation2 + $0x10] sm:$0xff]
    %v45 = vld [vmem:[#allocation2 + $0x18] sm:$0xff]
    %v46 = vld [vmem:[#allocation4] sm:$0xff]
    %v47 = vld [vmem:[#allocation4 + $0x8] sm:$0xff]
    %v48 = vld [vmem:[#allocation4 + $0x10] sm:$0xff]
    %v49 = vld [vmem:[#allocation4 + $0x18] sm:$0xff]
    %v50 = vld [vmem:[%s2] sm:$0x3]
    %v51 = vld [vmem:[%s2 + $0x2] sm:$0x3]
    %v52 = vld [vmem:[%s2 + $0x4] sm:$0x3]
    %v53 = vld [vmem:[%s2 + $0x6] sm:$0x3]
    %v54 = vunpack.c.0.s8 %v50
    %v55 = vunpack.c.0.s8 %v51
    %v56 = vunpack.c.0.s8 %v52
    %v57 = vunpack.c.0.s8 %v53
    %v58 = vcvt.s32.f32 %v54
    %v59 = vcvt.s32.f32 %v55
    %v60 = vcvt.s32.f32 %v56
    %v61 = vcvt.s32.f32 %v57
    %v62 = vmul.f32 %v58, %v46
    %v63 = vmul.f32 %v59, %v47
    %v64 = vmul.f32 %v60, %v48
    %v65 = vmul.f32 %v61, %v49
    %v66 = vmul.f32 %v58, %v42
    %v67 = vmul.f32 %v59, %v43
    %v68 = vmul.f32 %v60, %v44
    %v69 = vmul.f32 %v61, %v45
    %v70 = vadd.f32 %v58, %v59
    %v71 = vadd.f32 %v70, %v60
    %v72 = vadd.f32 %v71, %v61
    %v73 = vadd.f32 %v62, %v63
    %v74 = vadd.f32 %v73, %v64
    %v75 = vadd.f32 %v74, %v65
    %v76 = vmul.f32 %v62, %v46
    %v77 = vmul.f32 %v63, %v47
    %v78 = vmul.f32 %v64, %v48
    %v79 = vmul.f32 %v65, %v49
    %v80 = vadd.f32 %v76, %v77
    %v81 = vadd.f32 %v80, %v78
    %v82 = vadd.f32 %v81, %v79
    %v83 = vadd.f32 %v66, %v67
    %v84 = vadd.f32 %v83, %v68
    %v85 = vadd.f32 %v84, %v69
    %v86 = vmul.f32 %v66, %v42
    %v87 = vmul.f32 %v67, %v43
    %v88 = vmul.f32 %v68, %v44
    %v89 = vmul.f32 %v69, %v45
    %v90 = vadd.f32 %v86, %v87
    %v91 = vadd.f32 %v90, %v88
    %v92 = vadd.f32 %v91, %v89
    %v93 = vmul.f32 %v66, %v46
    %v94 = vmul.f32 %v67, %v47
    %v95 = vmul.f32 %v68, %v48
    %v96 = vmul.f32 %v69, %v49
    %v97 = vadd.f32 %v93, %v94
    %v98 = vadd.f32 %v97, %v95
    %v99 = vadd.f32 %v98, %v96
    %v100 = vadd.f32 %v46, %v47
    %v101 = vadd.f32 %v100, %v48
    %v102 = vadd.f32 %v101, %v49
    %v103 = vmul.f32 %v46, %v46
    %v104 = vmul.f32 %v47, %v47
    %v105 = vmul.f32 %v48, %v48
    %v106 = vmul.f32 %v49, %v49
    %v107 = vadd.f32 %v103, %v104
    %v108 = vadd.f32 %v107, %v105
    %v109 = vadd.f32 %v108, %v106
    %p110 = scmp.eq.s32.totalorder 0, 0
    // Predicated region
    $region22: #{masked_recon_loss.1} parent=1 // pred_check
      %p111 = pneg %p110
    $region23: #{masked_recon_loss.1} parent=1 // pred_check_branch
      %113 = sbr.rel (%p111) target = $region25
    $region24: #{masked_recon_loss.1} parent=1 // pred_region
      %114 = vst [vmem:[%s3] sm:$0xff] %v72
      %s115 = scalar_lea.vmem %s3, 8
      %116 = vst [vmem:[%s115] sm:$0xff] %v75
      %s117 = scalar_lea.vmem %s3, 16
      %118 = vst [vmem:[%s117] sm:$0xff] %v82
      %s119 = scalar_lea.vmem %s3, 24
      %120 = vst [vmem:[%s119] sm:$0xff] %v85
      %s121 = scalar_lea.vmem %s3, 32
      %122 = vst [vmem:[%s121] sm:$0xff] %v92
      %s123 = scalar_lea.vmem %s3, 40
      %124 = vst [vmem:[%s123] sm:$0xff] %v99
      %s125 = scalar_lea.vmem %s3, 48
      %126 = vst [vmem:[%s125] sm:$0xff] %v102
      %s127 = scalar_lea.vmem %s3, 56
      %128 = vst [vmem:[%s127] sm:$0xff] %v109
    $region25: #{masked_recon_loss.1} parent=1 // pred_fallthru
      _
    %p129 = scmp.gt.s32.totalorder 0, 0
    // Predicated region
    $region26: #{masked_recon_loss.1} parent=1 // pred_check
      %p130 = pneg %p129
    $region27: #{masked_recon_loss.1} parent=1 // pred_check_branch
      %132 = sbr.rel (%p130) target = $region29
    $region28: #{masked_recon_loss.1} parent=1 // pred_region
      %v133 = vld [vmem:[%s3] sm:$0xff]
      %v134 = vadd.f32 %v133, %v72
      %135 = vst [vmem:[%s3] sm:$0xff] %v134
      %s136 = scalar_lea.vmem %s3, 8
      %v137 = vld [vmem:[%s136] sm:$0xff]
      %v138 = vadd.f32 %v137, %v75
      %139 = vst [vmem:[%s136] sm:$0xff] %v138
      %s140 = scalar_lea.vmem %s3, 16
      %v141 = vld [vmem:[%s140] sm:$0xff]
      %v142 = vadd.f32 %v141, %v82
      %143 = vst [vmem:[%s140] sm:$0xff] %v142
      %s144 = scalar_lea.vmem %s3, 24
      %v145 = vld [vmem:[%s144] sm:$0xff]
      %v146 = vadd.f32 %v145, %v85
      %147 = vst [vmem:[%s144] sm:$0xff] %v146
      %s148 = scalar_lea.vmem %s3, 32
      %v149 = vld [vmem:[%s148] sm:$0xff]
      %v150 = vadd.f32 %v149, %v92
      %151 = vst [vmem:[%s148] sm:$0xff] %v150
      %s152 = scalar_lea.vmem %s3, 40
      %v153 = vld [vmem:[%s152] sm:$0xff]
      %v154 = vadd.f32 %v153, %v99
      %155 = vst [vmem:[%s152] sm:$0xff] %v154
      %s156 = scalar_lea.vmem %s3, 48
      %v157 = vld [vmem:[%s156] sm:$0xff]
      %v158 = vadd.f32 %v157, %v102
      %159 = vst [vmem:[%s156] sm:$0xff] %v158
      %s160 = scalar_lea.vmem %s3, 56
      %v161 = vld [vmem:[%s160] sm:$0xff]
      %v162 = vadd.f32 %v161, %v109
      %163 = vst [vmem:[%s160] sm:$0xff] %v162
    $region29: #{masked_recon_loss.1} parent=1 // pred_fallthru
      _
    // Predicated region
    $region30: #{masked_recon_loss.1} parent=1 // pred_check
      _
    $region31: #{masked_recon_loss.1} parent=1 // pred_check_branch
      %165 = sbr.rel (0) target = $region33
    $region32: #{masked_recon_loss.1} parent=1 // pred_region
      _
    $region33: #{masked_recon_loss.1} parent=1 // pred_fallthru
      _
    // Predicated region
    $region34: #{masked_recon_loss.1} parent=1 // pred_check
      _
    $region35: #{masked_recon_loss.1} parent=1 // pred_check_branch
      %167 = sbr.rel (0) target = $region37
    $region36: #{masked_recon_loss.1} parent=1 // pred_region
      _
    $region37: #{masked_recon_loss.1} parent=1 // pred_fallthru
      _
    %168 = vsyncpa [#allocation3], 1
    %169 = vsyncpa [#allocation5], 1

</llo_original>
